<compile_context>
chip_gen: v5e
topology: v5e:2x2
jax: 0.10.0
libtpu: 0.0.40
codegen_flags: <defaults>
</compile_context>

<pallas_src>
import functools
import math

import jax
import jax.numpy as jnp
from jax import lax
from jax.experimental import pallas as pl
from jax.experimental.pallas import tpu as pltpu


GAMMA = 1.5
ALPHA = 0.25

MAX_TILE_ROWS = 2048   # (2048, 128) f32 block = 1 MiB per input per buffer


def _round_up(x, m):
    return ((x + m - 1) // m) * m


def _default_num_splits():
    """Megacore split factor: 2 TensorCores/chip on v7x, 1 on v2..v6."""
    try:
        kind = jax.devices()[0].device_kind.lower()
    except Exception:
        return 2
    for gen in ("v2", "v3", "v4", "v5", "v6"):
        if gen in kind:
            return 1
    return 2


def _focal_loss_kernel(pred_ref, true_ref, out_ref, *,
                       n_rows, tiles_per_split, gamma, alpha):
    """Elementwise focal-BCE + vreg-shaped partial-sum accumulation.

    pred_ref, true_ref : (tile_rows, 128) VMEM tiles (any float dtype)
    out_ref            : (8, 128) f32 partial-sum accumulator for this split
                         (same output block across the reduction axis)
    """
    c = pl.program_id(0)          # split (megacore) axis, "parallel"
    i = pl.program_id(1)          # reduction axis, "arbitrary"

    @pl.when(i == 0)
    def _():
        out_ref[...] = jnp.zeros_like(out_ref)

    tile_rows = pred_ref.shape[0]
    row0 = (c * tiles_per_split + i) * tile_rows   # logical first row of block

    x = pred_ref[...].astype(jnp.float32)
    z = true_ref[...].astype(jnp.float32)

    # One shared exp(-|x|) feeds both the numerically-stable BCE-with-logits
    #   bce = max(x, 0) - x*z + log1p(exp(-|x|))
    # and sigmoid(x) = where(x >= 0, 1/(1+e), e/(1+e)).
    e = jnp.exp(-jnp.abs(x))
    bce = jnp.maximum(x, 0.0) - x * z + jnp.log1p(e)
    # TODO(synk): pl.reciprocal(1+e, approx=True) would move this divide to the
    # EUP slot but perturbs sigmoid at ~1e-3 relative; kept exact for fidelity.
    inv = 1.0 / (1.0 + e)
    pred_prob = jnp.where(x >= 0.0, inv, e * inv)

    # Simplified focal algebra (saves ~4-5 VALU ops/element):
    #   1 - p_t      = p + z - 2*z*p
    #   alpha_factor = (1-alpha) + z*(2*alpha - 1)
    one_minus_pt = pred_prob + z * (1.0 - 2.0 * pred_prob)
    alpha_factor = (1.0 - alpha) + z * (2.0 * alpha - 1.0)
    if gamma == 1.5:
        modulating = one_minus_pt * jnp.sqrt(one_minus_pt)   # x**1.5, 1 EUP op
    else:
        modulating = one_minus_pt ** gamma
    loss = bce * alpha_factor * modulating

    is_full = row0 + tile_rows <= n_rows

    @pl.when(is_full)
    def _():
        # Leading-axis reduce = pure VPU vreg adds; no cross-lane XLU work, no
        # mask cost on full tiles (the overwhelmingly common case).
        out_ref[...] += loss.reshape(-1, 8, 128).sum(axis=0)

    @pl.when(jnp.logical_not(is_full))
    def _():
        # Ragged tail block (rows past n_rows hold undefined boundary data) and
        # any fully-out-of-range block produced by the per-split ceil rounding
        # (Pallas clamps its block index and re-reads valid data): mask at row
        # granularity so nothing is double-counted.  Only this block pays.
        row_idx = row0 + lax.broadcasted_iota(jnp.int32, loss.shape, 0)
        masked = jnp.where(row_idx < n_rows, loss, 0.0)
        out_ref[...] += masked.reshape(-1, 8, 128).sum(axis=0)


def focal_loss(pred, true, reduction="mean", gamma=GAMMA, alpha=ALPHA,
               num_splits=None):
    """FocalLoss(BCEWithLogitsLoss(reduction=reduction), gamma, alpha).

    pred, true: same shape, any rank (e.g. NCHW logits / targets).
    """
    assert pred.shape == true.shape
    n_elem = pred.size
    assert n_elem > 0

    rows = -(-n_elem // 128)                                  # ceil

    # Round tile rows to the packed sublane granularity of the input dtype.
    itemsize = jnp.dtype(pred.dtype).itemsize
    sub = {4: 8, 2: 16, 1: 32}.get(itemsize, 8)
    tile_rows = _round_up(min(MAX_TILE_ROWS, _round_up(rows, sub)), 8)

    tiles_total = -(-rows // tile_rows)
    if num_splits is None:
        num_splits = _default_num_splits()
    num_splits = max(1, min(num_splits, tiles_total))
    tiles_per_split = -(-tiles_total // num_splits)

    # Only pad the flat array to a whole number of 128-lane rows (<=127 elems);
    # the ragged row-tile tail is handled in-kernel, so there is no full
    # tile-grid zero-padding copy of the inputs.
    pred_flat = pred.reshape(-1)
    true_flat = true.reshape(-1)
    pad128 = rows * 128 - n_elem
    if pad128:
        # TODO(synk): for non-128-aligned sizes this pad still rewrites both
        # inputs once in HBM; a manual-DMA ragged tail would avoid even that.
        pred_flat = jnp.pad(pred_flat, (0, pad128))
        true_flat = jnp.pad(true_flat, (0, pad128))
    # Keep the producer dtype; cast to f32 inside the kernel (bf16 inputs halve
    # HBM traffic automatically).
    pred2d = pred_flat.reshape(rows, 128)
    true2d = true_flat.reshape(rows, 128)

    kernel = functools.partial(
        _focal_loss_kernel,
        n_rows=rows, tiles_per_split=tiles_per_split, gamma=gamma, alpha=alpha)

    partials = pl.pallas_call(
        kernel,
        out_shape=jax.ShapeDtypeStruct((num_splits * 8, 128), jnp.float32),
        grid_spec=pltpu.PrefetchScalarGridSpec(
            num_scalar_prefetch=0,
            grid=(num_splits, tiles_per_split),
            in_specs=[
                pl.BlockSpec((tile_rows, 128),
                             lambda c, i, t=tiles_per_split: (c * t + i, 0)),
                pl.BlockSpec((tile_rows, 128),
                             lambda c, i, t=tiles_per_split: (c * t + i, 0)),
            ],
            out_specs=pl.BlockSpec((8, 128), lambda c, i: (c, 0)),
        ),
        compiler_params=pltpu.CompilerParams(
            dimension_semantics=("parallel", "arbitrary"),
        ),
    )(pred2d, true2d)

    total = jnp.sum(partials)   # tiny (num_splits*8, 128) epilogue reduce
    if pad128:
        # Padded elements are x=0, z=0, each contributing exactly
        # log(2) * (1-alpha) * 0.5**gamma; subtract in closed form instead of
        # masking every element in-kernel.
        total = total - jnp.float32(
            pad128 * math.log(2.0) * (1.0 - alpha) * 0.5 ** gamma)

    if reduction == "mean":
        return total / jnp.float32(n_elem)
    elif reduction == "sum":
        return total
    else:
        # TODO(synk): reduction='none' needs an elementwise-output kernel
        # variant; yolov5 only uses 'mean', so we only reduce here.
        raise NotImplementedError("only 'mean' and 'sum' reductions supported")


def _focal_loss_ref(pred, true, reduction="mean", gamma=GAMMA, alpha=ALPHA):
    """Pure-JAX reference matching the PyTorch module semantics."""
    x = pred.astype(jnp.float32)
    z = true.astype(jnp.float32)
    bce = jnp.maximum(x, 0.0) - x * z + jnp.log1p(jnp.exp(-jnp.abs(x)))
    p = jax.nn.sigmoid(x)
    p_t = z * p + (1.0 - z) * (1.0 - p)
    alpha_factor = z * alpha + (1.0 - z) * (1.0 - alpha)
    loss = bce * alpha_factor * (1.0 - p_t) ** gamma
    if reduction == "mean":
        return loss.mean()
    return loss.sum()


if __name__ == "__main__":
    key = jax.random.PRNGKey(0)
    k1, k2, k3, k4 = jax.random.split(key, 4)

    # Small NCHW-shaped logits / targets consistent with a detection head.
    B, C, H, W = 2, 4, 16, 16
    pred = jax.random.normal(k1, (B, C, H, W), dtype=jnp.float32)
    true = (jax.random.uniform(k2, (B, C, H, W)) > 0.7).astype(jnp.float32)

    out = jax.block_until_ready(focal_loss(pred, true, reduction="mean"))
    ref = _focal_loss_ref(pred, true, reduction="mean")
    assert jnp.allclose(out, ref, rtol=1e-5, atol=1e-6), (out, ref)

    # Non-128-aligned size: exercises the closed-form pad correction and the
    # in-kernel row-granularity tail mask.
    pred2 = jax.random.normal(k3, (3, 5, 7, 11), dtype=jnp.float32)
    true2 = (jax.random.uniform(k4, (3, 5, 7, 11)) > 0.7).astype(jnp.float32)
    out2 = jax.block_until_ready(focal_loss(pred2, true2, reduction="mean"))
    ref2 = _focal_loss_ref(pred2, true2, reduction="mean")
    assert jnp.allclose(out2, ref2, rtol=1e-5, atol=1e-6), (out2, ref2)

    print("KERNEL_OK")
</pallas_src>

<mosaic_0001>
module attributes {stable_mosaic.version = 11 : i64} {
  func.func @_focal_loss_kernel(%arg0: i32, %arg1: i32, %arg2: memref<16x128xf32, #tpu.memory_space<vmem>>, %arg3: memref<16x128xf32, #tpu.memory_space<vmem>>, %arg4: memref<8x128xf32, #tpu.memory_space<vmem>>) attributes {dimension_semantics = [#tpu.dimension_semantics<parallel>, #tpu.dimension_semantics<arbitrary>], iteration_bounds = array<i64: 1, 1>, scalar_prefetch = 0 : i64, scratch_operands = 0 : i64, tpu.core_type = #tpu.core_type<tc>, window_params = [{transform_indices = @transform_0, window_bounds = array<i64: 16, 128>}, {transform_indices = @transform_1, window_bounds = array<i64: 16, 128>}, {transform_indices = @transform_2, window_bounds = array<i64: 8, 128>}]} {
    %c0_i32 = arith.constant 0 : i32
    %0 = arith.cmpi eq, %arg1, %c0_i32 : i32
    %1 = arith.extui %0 : i1 to i32
    %c0_i32_0 = arith.constant 0 : i32
    %2 = arith.cmpi ne, %1, %c0_i32_0 : i32
    scf.if %2 {
      %cst_16 = arith.constant 0.000000e+00 : f32
      %47 = vector.broadcast %cst_16 : f32 to vector<8x128xf32>
      %c0_17 = arith.constant 0 : index
      %c0_18 = arith.constant 0 : index
      %48 = vector.load %arg4[%c0_17, %c0_18] : memref<8x128xf32, #tpu.memory_space<vmem>>, vector<8x128xf32>
      tpu.vector_store %arg4[%c0_17, %c0_18], %47 {strides = array<i32>} : memref<8x128xf32, #tpu.memory_space<vmem>>, vector<8x128xf32>,
    } else {
    }
    %c1_i32 = arith.constant 1 : i32
    %3 = arith.muli %arg0, %c1_i32 : i32
    %4 = arith.addi %3, %arg1 : i32
    %c16_i32 = arith.constant 16 : i32
    %5 = arith.muli %4, %c16_i32 : i32
    %c0 = arith.constant 0 : index
    %c0_1 = arith.constant 0 : index
    %6 = vector.load %arg2[%c0, %c0_1] : memref<16x128xf32, #tpu.memory_space<vmem>>, vector<16x128xf32>
    %c0_2 = arith.constant 0 : index
    %c0_3 = arith.constant 0 : index
    %7 = vector.load %arg3[%c0_2, %c0_3] : memref<16x128xf32, #tpu.memory_space<vmem>>, vector<16x128xf32>
    %8 = math.absf %6 : vector<16x128xf32>
    %cst = arith.constant 0.000000e+00 : f32
    %9 = vector.broadcast %cst : f32 to vector<16x128xf32>
    %10 = arith.subf %9, %8 : vector<16x128xf32>
    %11 = math.exp %10 : vector<16x128xf32>
    %cst_4 = arith.constant 0.000000e+00 : f32
    %12 = vector.broadcast %cst_4 : f32 to vector<16x128xf32>
    %13 = arith.maximumf %6, %12 : vector<16x128xf32>
    %14 = arith.mulf %6, %7 : vector<16x128xf32>
    %15 = arith.subf %13, %14 : vector<16x128xf32>
    %16 = math.log1p %11 : vector<16x128xf32>
    %17 = arith.addf %15, %16 : vector<16x128xf32>
    %cst_5 = arith.constant 1.000000e+00 : f32
    %18 = vector.broadcast %cst_5 : f32 to vector<16x128xf32>
    %19 = arith.addf %18, %11 : vector<16x128xf32>
    %cst_6 = arith.constant 1.000000e+00 : f32
    %20 = vector.broadcast %cst_6 : f32 to vector<16x128xf32>
    %21 = arith.divf %20, %19 : vector<16x128xf32>
    %cst_7 = arith.constant 0.000000e+00 : f32
    %22 = vector.broadcast %cst_7 : f32 to vector<16x128xf32>
    %23 = arith.cmpf oge, %6, %22 : vector<16x128xf32>
    %24 = arith.mulf %11, %21 : vector<16x128xf32>
    %25 = arith.select %23, %21, %24 : vector<16x128xi1>, vector<16x128xf32>
    %cst_8 = arith.constant 2.000000e+00 : f32
    %26 = vector.broadcast %cst_8 : f32 to vector<16x128xf32>
    %27 = arith.mulf %26, %25 : vector<16x128xf32>
    %cst_9 = arith.constant 1.000000e+00 : f32
    %28 = vector.broadcast %cst_9 : f32 to vector<16x128xf32>
    %29 = arith.subf %28, %27 : vector<16x128xf32>
    %30 = arith.mulf %7, %29 : vector<16x128xf32>
    %31 = arith.addf %25, %30 : vector<16x128xf32>
    %cst_10 = arith.constant -5.000000e-01 : f32
    %32 = vector.broadcast %cst_10 : f32 to vector<16x128xf32>
    %33 = arith.mulf %7, %32 : vector<16x128xf32>
    %cst_11 = arith.constant 7.500000e-01 : f32
    %34 = vector.broadcast %cst_11 : f32 to vector<16x128xf32>
    %35 = arith.addf %34, %33 : vector<16x128xf32>
    %36 = math.sqrt %31 : vector<16x128xf32>
    %37 = arith.mulf %31, %36 : vector<16x128xf32>
    %38 = arith.mulf %17, %35 : vector<16x128xf32>
    %39 = arith.mulf %38, %37 : vector<16x128xf32>
    %c16_i32_12 = arith.constant 16 : i32
    %40 = arith.addi %5, %c16_i32_12 : i32
    %c16_i32_13 = arith.constant 16 : i32
    %41 = arith.cmpi sle, %40, %c16_i32_13 : i32
    %42 = arith.extui %41 : i1 to i32
    %c0_i32_14 = arith.constant 0 : i32
    %43 = arith.cmpi ne, %42, %c0_i32_14 : i32
    scf.if %43 {
      %c0_16 = arith.constant 0 : index
      %c0_17 = arith.constant 0 : index
      %47 = vector.load %arg4[%c0_16, %c0_17] : memref<8x128xf32, #tpu.memory_space<vmem>>, vector<8x128xf32>
      %48 = vector.shape_cast %39 : vector<16x128xf32> to vector<2x8x128xf32>
      %cst_18 = arith.constant dense<0.000000e+00> : vector<8x128xf32>
      %49 = vector.multi_reduction <add>, %48, %cst_18 [0] : vector<2x8x128xf32> to vector<8x128xf32>
      %50 = arith.addf %47, %49 : vector<8x128xf32>
      %c0_19 = arith.constant 0 : index
      %c0_20 = arith.constant 0 : index
      %51 = vector.load %arg4[%c0_19, %c0_20] : memref<8x128xf32, #tpu.memory_space<vmem>>, vector<8x128xf32>
      tpu.vector_store %arg4[%c0_19, %c0_20], %50 {strides = array<i32>} : memref<8x128xf32, #tpu.memory_space<vmem>>, vector<8x128xf32>,
    } else {
    }
    %true = arith.constant true
    %44 = arith.xori %41, %true : i1
    %45 = arith.extui %44 : i1 to i32
    %c0_i32_15 = arith.constant 0 : i32
    %46 = arith.cmpi ne, %45, %c0_i32_15 : i32
    scf.if %46 {
      %47 = tpu.iota {dimensions = array<i32: 0>} : vector<16x128xi32>
      %48 = vector.broadcast %5 : i32 to vector<16x128xi32>
      %49 = arith.addi %48, %47 : vector<16x128xi32>
      %c16_i32_16 = arith.constant 16 : i32
      %50 = vector.broadcast %c16_i32_16 : i32 to vector<16x128xi32>
      %51 = arith.cmpi slt, %49, %50 : vector<16x128xi32>
      %cst_17 = arith.constant 0.000000e+00 : f32
      %52 = vector.broadcast %cst_17 : f32 to vector<16x128xf32>
      %53 = arith.select %51, %39, %52 : vector<16x128xi1>, vector<16x128xf32>
      %c0_18 = arith.constant 0 : index
      %c0_19 = arith.constant 0 : index
      %54 = vector.load %arg4[%c0_18, %c0_19] : memref<8x128xf32, #tpu.memory_space<vmem>>, vector<8x128xf32>
      %55 = vector.shape_cast %53 : vector<16x128xf32> to vector<2x8x128xf32>
      %cst_20 = arith.constant dense<0.000000e+00> : vector<8x128xf32>
      %56 = vector.multi_reduction <add>, %55, %cst_20 [0] : vector<2x8x128xf32> to vector<8x128xf32>
      %57 = arith.addf %54, %56 : vector<8x128xf32>
      %c0_21 = arith.constant 0 : index
      %c0_22 = arith.constant 0 : index
      %58 = vector.load %arg4[%c0_21, %c0_22] : memref<8x128xf32, #tpu.memory_space<vmem>>, vector<8x128xf32>
      tpu.vector_store %arg4[%c0_21, %c0_22], %57 {strides = array<i32>} : memref<8x128xf32, #tpu.memory_space<vmem>>, vector<8x128xf32>,
    } else {
    }
    return
  }
  func.func @transform_0(%arg0: i32, %arg1: i32) -> (i32, i32) {
    %c1_i32 = arith.constant 1 : i32
    %0 = arith.muli %arg0, %c1_i32 : i32
    %1 = arith.addi %0, %arg1 : i32
    %c0_i32 = arith.constant 0 : i32
    %c0_i32_0 = arith.constant 0 : i32
    return %1, %c0_i32 : i32, i32
  }
  func.func @transform_1(%arg0: i32, %arg1: i32) -> (i32, i32) {
    %c1_i32 = arith.constant 1 : i32
    %0 = arith.muli %arg0, %c1_i32 : i32
    %1 = arith.addi %0, %arg1 : i32
    %c0_i32 = arith.constant 0 : i32
    %c0_i32_0 = arith.constant 0 : i32
    return %1, %c0_i32 : i32, i32
  }
  func.func @transform_2(%arg0: i32, %arg1: i32) -> (i32, i32) {
    %c0_i32 = arith.constant 0 : i32
    %c0_i32_0 = arith.constant 0 : i32
    return %arg0, %c0_i32 : i32, i32
  }
}

</mosaic_0001>

<llo_original>
// kernel: tpu_custom_call.1
$region0: #{tpu_custom_call.1}
  #allocation0 [shape = 'u32[]', space=smem, size = 0x4, offset = 0x4, fixed_abs, tag = 'smem constant byte address 0x4 - core index']
  #allocation1 [shape = 'u32[72,128]{1,0:T(1,128)}', space=vmem, size = 0x9000, scoped, tag = 'internal scratch']
  %s0 = inlined_call_operand.hbm [shape: f32[16,128], index: 0, kind: input, shape index: {}]
  %s1 = inlined_call_operand.hbm [shape: f32[16,128], index: 1, kind: input, shape index: {}]
  %s2 = inlined_call_operand.hbm [shape: f32[8,128], index: 2, kind: output, shape index: {}]
  %s3 = sld [smem:[#allocation0]]
  $region38: #{tpu_custom_call.1} parent=0
    _
  %s5 = ssub.s32 1, %s3
  %s6 = scalar_select 0, %s5, %s3
  $region1: #{tpu_custom_call.1} parent=0
    #allocation2 [shape = 'u8[8192]{0}', space=vmem, size = 0x2000, scoped, tag = 'input window, operand 0, single buffered']
    #allocation3 [shape = 's32[1]{0}', space=sflag, size = 0x4, scoped, tag = 'scoped memory for tpu_custom_call.1']
    #allocation4 [shape = 's32[1]{0}', space=sflag, size = 0x4, scoped, tag = 'scoped memory for tpu_custom_call.1']
    #allocation5 [shape = 'u8[8192]{0}', space=vmem, size = 0x2000, scoped, tag = 'input window, operand 1, single buffered']
    #allocation6 [shape = 's32[1]{0}', space=sflag, size = 0x4, scoped, tag = 'scoped memory for tpu_custom_call.1']
    #allocation7 [shape = 'u8[4096]{0}', space=vmem, size = 0x1000, scoped, tag = 'output window, operand 0, single buffered']
    %7 = vsyncpa [#allocation3], 0
    %8 = vsyncpa [#allocation6], 0
    %9 = vsyncpa [#allocation4], 0
    // Predicated region
    $region2: #{tpu_custom_call.1} parent=1 // pred_check
      _
    $region3: #{tpu_custom_call.1} parent=1 // pred_check_branch
      %11 = sbr.rel (0) target = $region5
    $region4: #{tpu_custom_call.1} parent=1 // pred_region
      %s12 = sadd.s32 0, 0
      %s13 = smul.u32 2, %s12
      %15 = vsyncadd [#allocation3], 0
      %s16 = smul.addr %s13, 8
      %s17 = scalar_lea.hbm %s0, %s16
      %s18 = sshll.u32 %s17, 4
      %s19 = int_to_ptr.hbm [resolvable:$true] %s18
      %s20 = sshll.u32 [#allocation2], 4
      %s21 = int_to_ptr.vmem [resolvable:$true] %s20
      %26 = dma.hbm_to_vmem [thread:$0]  %s19, 256, %s21, [#allocation3], 128, 128, 8
    $region5: #{tpu_custom_call.1} parent=1 // pred_fallthru
      _
    // Predicated region
    $region6: #{tpu_custom_call.1} parent=1 // pred_check
      _
    $region7: #{tpu_custom_call.1} parent=1 // pred_check_branch
      %28 = sbr.rel (0) target = $region9
    $region8: #{tpu_custom_call.1} parent=1 // pred_region
      %s29 = sadd.s32 0, 0
      %s30 = smul.u32 2, %s29
      %32 = vsyncadd [#allocation6], 0
      %s33 = smul.addr %s30, 8
      %s34 = scalar_lea.hbm %s1, %s33
      %s35 = sshll.u32 %s34, 4
      %s36 = int_to_ptr.hbm [resolvable:$true] %s35
      %s37 = sshll.u32 [#allocation5], 4
      %s38 = int_to_ptr.vmem [resolvable:$true] %s37
      %43 = dma.hbm_to_vmem [thread:$0]  %s36, 256, %s38, [#allocation6], 128, 128, 8
    $region9: #{tpu_custom_call.1} parent=1 // pred_fallthru
      _
    // Predicated region
    $region10: #{tpu_custom_call.1} parent=1 // pred_check
      _
    $region11: #{tpu_custom_call.1} parent=1 // pred_check_branch
      %45 = sbr.rel (0) target = $region13
    $region12: #{tpu_custom_call.1} parent=1 // pred_region
      %47 = dma.done [#allocation3], 256
    $region13: #{tpu_custom_call.1} parent=1 // pred_fallthru
      _
    // Predicated region
    $region14: #{tpu_custom_call.1} parent=1 // pred_check
      _
    $region15: #{tpu_custom_call.1} parent=1 // pred_check_branch
      %49 = sbr.rel (0) target = $region17
    $region16: #{tpu_custom_call.1} parent=1 // pred_region
      %51 = dma.done [#allocation6], 256
    $region17: #{tpu_custom_call.1} parent=1 // pred_fallthru
      _
    %s52 = sadd.s32 0, 0
    %s53 = smul.u32 2, %s52
    %s54 = sadd.s32 0, 0
    %s55 = smul.u32 2, %s54
    %p56 = scmp.eq.s32.totalorder 0, 0
    // Predicated region
    $region18: #{tpu_custom_call.1} parent=1 // pred_check
      %p57 = pneg %p56
    $region19: #{tpu_custom_call.1} parent=1 // pred_check_branch
      %59 = sbr.rel (%p57) target = $region21
    $region20: #{tpu_custom_call.1} parent=1 // pred_region
      %60 = vst [vmem:[#allocation7] sm:$0xff] 0.0
    $region21: #{tpu_custom_call.1} parent=1 // pred_fallthru
      _
    %s61 = sadd.s32 0, 0
    %s62 = smul.u32 %s61, 16
    %v63 = vld [vmem:[#allocation2] sm:$0xff]
    %v64 = vld [vmem:[#allocation2 + $0x8] sm:$0xff]
    %v65 = vld [vmem:[#allocation5] sm:$0xff]
    %v66 = vld [vmem:[#allocation5 + $0x8] sm:$0xff]
    %v67 = vand.u32 2147483647, %v63
    %v68 = vand.u32 2147483647, %v64
    %v69 = vsub.f32 0.0, %v67
    %v70 = vsub.f32 0.0, %v68
    %v71 = vmul.f32 %v69, 1.442695
    %v72 = vpow.pop %v71
    %v73 = vmul.f32 %v70, 1.442695
    %v74 = vpow.pop %v73
    %v75 = vmax.f32 %v63, 0.0
    %v76 = vmax.f32 %v64, 0.0
    %v77 = vmul.f32 %v63, %v65
    %v78 = vmul.f32 %v64, %v66
    %v79 = vsub.f32 %v75, %v77
    %v80 = vsub.f32 %v76, %v78
    %v81 = vadd.f32 %v72, 1.0
    %v82 = vlog2.pop %v81
    %v83 = vmul.f32 %v82, 0.6931472
    %v84 = vmul.f32 -0.5, %v72
    %v85 = vadd.f32 %v84, 1.0
    %v86 = vmul.f32 %v85, %v72
    %v87 = vand.u32 2147483647, %v72
    %vm88 = vcmp.lt.f32.partialorder %v87, 0.0004427343
    %v89 = vsel %vm88, %v86, %v83
    %v90 = vadd.f32 %v74, 1.0
    %v91 = vlog2.pop %v90
    %v92 = vmul.f32 %v91, 0.6931472
    %v93 = vmul.f32 -0.5, %v74
    %v94 = vadd.f32 %v93, 1.0
    %v95 = vmul.f32 %v94, %v74
    %v96 = vand.u32 2147483647, %v74
    %vm97 = vcmp.lt.f32.partialorder %v96, 0.0004427343
    %v98 = vsel %vm97, %v95, %v92
    %v99 = vadd.f32 %v79, %v89
    %v100 = vadd.f32 %v80, %v98
    %v101 = vadd.f32 %v72, 1.0
    %v102 = vadd.f32 %v74, 1.0
    %v103 = vrcp.pop %v101
    %v104 = vmul.f32 %v101, %v103
    %v105 = vsub.f32 1.0, %v104
    %v106 = vmul.f32 %v103, %v105
    %v107 = vadd.f32 %v103, %v106
    %vm108 = vweird.f32 %v101
    %vm109 = vweird.f32 %v103
    %vm110 = vmor %vm108, %vm109
    %v111 = vsel %vm110, %v103, %v107
    %v112 = vand.u32 2147483647, %v101
    %vm113 = vcmp.eq.f32.partialorder %v112, 8.507059e+37
    %v114 = vand.u32 %v101, 2147483648
    %v115 = vor.u32 1.1754944e-38, %v114
    %v116 = vsel %vm113, %v115, %v111
    %v117 = vmul.f32 1.0, %v116
    %v118 = vrcp.pop %v102
    %v119 = vmul.f32 %v102, %v118
    %v120 = vsub.f32 1.0, %v119
    %v121 = vmul.f32 %v118, %v120
    %v122 = vadd.f32 %v118, %v121
    %vm123 = vweird.f32 %v102
    %vm124 = vweird.f32 %v118
    %vm125 = vmor %vm123, %vm124
    %v126 = vsel %vm125, %v118, %v122
    %v127 = vand.u32 2147483647, %v102
    %vm128 = vcmp.eq.f32.partialorder %v127, 8.507059e+37
    %v129 = vand.u32 %v102, 2147483648
    %v130 = vor.u32 1.1754944e-38, %v129
    %v131 = vsel %vm128, %v130, %v126
    %v132 = vmul.f32 1.0, %v131
    %vm133 = vcmp.ge.f32.partialorder %v63, 0.0
    %vm134 = vcmp.ge.f32.partialorder %v64, 0.0
    %v135 = vmul.f32 %v72, %v117
    %v136 = vmul.f32 %v74, %v132
    %v137 = vsel %vm133, %v117, %v135
    %v138 = vsel %vm134, %v132, %v136
    %v139 = vmul.f32 %v137, 2.0
    %v140 = vmul.f32 %v138, 2.0
    %v141 = vsub.f32 1.0, %v139
    %v142 = vsub.f32 1.0, %v140
    %v143 = vmul.f32 %v65, %v141
    %v144 = vmul.f32 %v66, %v142
    %v145 = vadd.f32 %v137, %v143
    %v146 = vadd.f32 %v138, %v144
    %v147 = vmul.f32 %v65, -0.5
    %v148 = vmul.f32 %v66, -0.5
    %v149 = vadd.f32 %v147, 0.75
    %v150 = vadd.f32 %v148, 0.75
    %v151 = vrsqrt.pop %v145
    %v152 = vmul.f32 %v151, %v145
    %v153 = vmul.f32 %v152, %v151
    %v154 = vmul.f32 0.5, %v153
    %v155 = vsub.f32 1.5, %v154
    %v156 = vmul.f32 %v151, %v155
    %v157 = vmul.f32 %v145, %v156
    %vm158 = vcmp.eq.f32.partialorder %v145, inf
    %v159 = vsel %vm158, %v145, %v157
    %vm160 = vcmp.eq.f32.partialorder %v145, 0.0
    %v161 = vand.u32 %v145, 2147483648
    %v162 = vsel %vm160, %v161, %v159
    %v163 = vrsqrt.pop %v146
    %v164 = vmul.f32 %v163, %v146
    %v165 = vmul.f32 %v164, %v163
    %v166 = vmul.f32 0.5, %v165
    %v167 = vsub.f32 1.5, %v166
    %v168 = vmul.f32 %v163, %v167
    %v169 = vmul.f32 %v146, %v168
    %vm170 = vcmp.eq.f32.partialorder %v146, inf
    %v171 = vsel %vm170, %v146, %v169
    %vm172 = vcmp.eq.f32.partialorder %v146, 0.0
    %v173 = vand.u32 %v146, 2147483648
    %v174 = vsel %vm172, %v173, %v171
    %v175 = vmul.f32 %v145, %v162
    %v176 = vmul.f32 %v146, %v174
    %v177 = vmul.f32 %v99, %v149
    %v178 = vmul.f32 %v100, %v150
    %v179 = vmul.f32 %v177, %v175
    %v180 = vmul.f32 %v178, %v176
    %s181 = sadd.s32 %s62, 16
    %p182 = scmp.le.s32.totalorder %s181, 16
    // Predicated region
    $region22: #{tpu_custom_call.1} parent=1 // pred_check
      %p183 = pneg %p182
    $region23: #{tpu_custom_call.1} parent=1 // pred_check_branch
      %185 = sbr.rel (%p183) target = $region25
    $region24: #{tpu_custom_call.1} parent=1 // pred_region
      %v186 = vld [vmem:[#allocation7] sm:$0xff]
      %v187 = vadd.f32 %v179, %v180
      %v188 = vadd.f32 %v186, %v187
      %189 = vst [vmem:[#allocation7] sm:$0xff] %v188
    $region25: #{tpu_custom_call.1} parent=1 // pred_fallthru
      _
    %p190 = scmp.gt.s32.totalorder %s181, 16
    // Predicated region
    $region26: #{tpu_custom_call.1} parent=1 // pred_check
      %p191 = pneg %p190
    $region27: #{tpu_custom_call.1} parent=1 // pred_check_branch
      %193 = sbr.rel (%p191) target = $region29
    $region28: #{tpu_custom_call.1} parent=1 // pred_region
      %v194 = vlaneseq
      %v195 = vshrl.u32 %v194, 7
      %v196 = vadd.s32 %v195, 8
      %v197 = vstv %s62
      %v198 = vadd.s32 %v197, %v195
      %v199 = vadd.s32 %v197, %v196
      %vm200 = vcmp.lt.s32.totalorder %v198, 16
      %vm201 = vcmp.lt.s32.totalorder %v199, 16
      %v202 = vsel %vm200, %v179, 0.0
      %v203 = vsel %vm201, %v180, 0.0
      %v204 = vld [vmem:[#allocation7] sm:$0xff]
      %v205 = vadd.f32 %v202, %v203
      %v206 = vadd.f32 %v204, %v205
      %207 = vst [vmem:[#allocation7] sm:$0xff] %v206
    $region29: #{tpu_custom_call.1} parent=1 // pred_fallthru
      _
    // Predicated region
    $region30: #{tpu_custom_call.1} parent=1 // pred_check
      _
    $region31: #{tpu_custom_call.1} parent=1 // pred_check_branch
      %209 = sbr.rel (0) target = $region33
    $region32: #{tpu_custom_call.1} parent=1 // pred_region
      %211 = vsyncadd [#allocation4], 0
      %s213 = sshll.u32 [#allocation7], 4
      %s214 = int_to_ptr.vmem [resolvable:$true] %s213
      %s215 = sshll.u32 %s2, 4
      %s216 = int_to_ptr.hbm [resolvable:$true] %s215
      %218 = dma.vmem_to_hbm [thread:$0]  %s214, 128, %s216, [#allocation4]
    $region33: #{tpu_custom_call.1} parent=1 // pred_fallthru
      _
    // Predicated region
    $region34: #{tpu_custom_call.1} parent=1 // pred_check
      _
    $region35: #{tpu_custom_call.1} parent=1 // pred_check_branch
      %220 = sbr.rel (0) target = $region37
    $region36: #{tpu_custom_call.1} parent=1 // pred_region
      %222 = dma.done [#allocation4], 128
    $region37: #{tpu_custom_call.1} parent=1 // pred_fallthru
      _
    %223 = vsyncpa [#allocation3], 1
    %224 = vsyncpa [#allocation6], 1
    %225 = vsyncpa [#allocation4], 1

</llo_original>
